<compile_context>
chip_gen: v7x
topology: tpu7x:2x2x1
jax: 0.10.0
libtpu: 0.0.40
codegen_flags: <defaults>
</compile_context>

<pallas_src>
import jax
import jax.numpy as jnp
import numpy as np
from jax.experimental import pallas as pl
from jax.experimental.pallas import tpu as pltpu
from jax.scipy.linalg import block_diag


# ----------------------------------------------------------------------------
# Kernel
# ----------------------------------------------------------------------------
def _make_fused_ffn_kernel(num_mid):
    """One fused kernel for all heads; processes one (TM, Cin) row tile.

    refs = (x, [w_0, t_0, ..., w_{num_mid-1}, t_{num_mid-1}], w_final, b_final, out)
      x        : (TM, Cin)            bf16
      w_l      : folded conv weights  bf16  (BN scale already folded in)
      t_l      : folded BN shift      f32   (1, width_l)
      w_final  : block-diag final conv, zero-padded to N_PAD cols, bf16
      b_final  : final bias, zero-padded to N_PAD cols, f32 (1, N_PAD)
      out      : (TM, N_PAD)          bf16  (lane-dense store)
    """

    def kernel(*refs):
        x_ref = refs[0]
        o_ref = refs[-1]
        h = x_ref[...]                                    # (TM, Cin) bf16
        idx = 1
        for _ in range(num_mid):
            w = refs[idx][...]                            # bf16
            t = refs[idx + 1][...]                        # f32 (1, width)
            idx += 2
            h = jnp.dot(h, w, preferred_element_type=jnp.float32)
            h = jnp.maximum(h + t, 0.0).astype(jnp.bfloat16)   # BN shift + ReLU
        wf = refs[idx][...]                               # bf16 (K, N_PAD)
        bf = refs[idx + 1][...]                           # f32  (1, N_PAD)
        y = jnp.dot(h, wf, preferred_element_type=jnp.float32) + bf
        o_ref[...] = y.astype(o_ref.dtype)                # full-lane unmasked store

    return kernel


# ----------------------------------------------------------------------------
# Wrapper
# ----------------------------------------------------------------------------
def _row_tile(bl):
    """Row (B*L) tile: large enough to amortize per-step overhead at big BL,
    but always >= 2 grid steps (v7x megacore) and a multiple of 8 sublanes."""
    if bl >= 1024:
        return 512
    if bl >= 512:
        return 256
    half = -(-bl // 2)                     # ceil(bl / 2)
    return max(8, -(-half // 8) * 8)       # round up to multiple of 8


def ffn_forward(x_ncl, fused):
    """FFN.forward: x_ncl is [B, C, L] (PyTorch Conv1d layout).

    Returns dict head -> [B, classes, L] (f32).
    """
    mid_ws, mid_ts, final_w, final_b, head_slices, c_total = fused
    B, C, L = x_ncl.shape
    BL = B * L
    n_pad = final_w.shape[1]               # lane-dense (multiple of 128)

    # [B, C, L] -> [B, L, C] -> (B*L, C), bf16 matmul operand.
    x_flat = jnp.transpose(x_ncl, (0, 2, 1)).reshape(BL, C).astype(jnp.bfloat16)

    tm = _row_tile(BL)
    n_blocks = -(-BL // tm)
    bl_pad = n_blocks * tm
    if bl_pad != BL:
        x_flat = jnp.pad(x_flat, ((0, bl_pad - BL), (0, 0)))

    def resident(shape):                    # whole-array block, fetched once
        return pl.BlockSpec(shape, lambda i: (0, 0))

    inputs = [x_flat]
    in_specs = [pl.BlockSpec((tm, C), lambda i: (i, 0))]
    for w, t in zip(mid_ws, mid_ts):
        inputs += [w, t]
        in_specs += [resident(w.shape), resident(t.shape)]
    inputs += [final_w, final_b]
    in_specs += [resident(final_w.shape), resident(final_b.shape)]

    all_ws = list(mid_ws) + [final_w]
    flops = int(sum(2 * bl_pad * w.shape[0] * w.shape[1] for w in all_ws))
    bytes_accessed = int(sum(a.size * a.dtype.itemsize for a in inputs)
                         + bl_pad * n_pad * 2)

    y_flat = pl.pallas_call(
        _make_fused_ffn_kernel(len(mid_ws)),
        grid=(n_blocks,),
        out_shape=jax.ShapeDtypeStruct((bl_pad, n_pad), jnp.bfloat16),
        in_specs=in_specs,
        out_specs=pl.BlockSpec((tm, n_pad), lambda i: (i, 0)),
        compiler_params=pltpu.CompilerParams(
            dimension_semantics=("parallel",)),
        cost_estimate=pl.CostEstimate(
            flops=flops, transcendentals=0, bytes_accessed=bytes_accessed),
    )(*inputs)

    # Strip row/lane padding, single layout fixup for all heads, cheap slices.
    y = y_flat[:BL, :c_total].reshape(B, L, c_total).astype(jnp.float32)
    y = jnp.transpose(y, (0, 2, 1))                       # [B, Ctot, L]
    return {head: y[:, lo:hi, :] for head, (lo, hi) in head_slices.items()}


# ----------------------------------------------------------------------------
# Parameter construction / fusion
# ----------------------------------------------------------------------------
def init_ffn_params(key, in_channels, heads, head_conv, init_bias):
    """Deterministic synthetic parameters mirroring FFN.__init__ / init_weights.

    Per head with (classes, num_conv):
      - (num_conv - 1) blocks: Conv1d(c_in -> head_conv, k=1, bias=False) + BN1d
        (folded to scale/shift) + ReLU
      - final Conv1d(head_conv -> classes, k=1, bias=True)
      - heatmap head final bias filled with init_bias (=-2.19)
    Conv1d weight (out, in, 1) is stored here transposed as (in, out).
    """
    eps = 1e-5
    params = {}
    for head, (classes, num_conv) in heads.items():
        mid = []
        c_in = in_channels
        for _ in range(num_conv - 1):
            key, kw, kg, kb, km, kv = jax.random.split(key, 6)
            w = jax.random.normal(kw, (c_in, head_conv), jnp.float32) * 0.05
            gamma = 1.0 + 0.1 * jax.random.normal(kg, (1, head_conv), jnp.float32)
            beta = 0.1 * jax.random.normal(kb, (1, head_conv), jnp.float32)
            mean = 0.1 * jax.random.normal(km, (1, head_conv), jnp.float32)
            var = jnp.abs(jax.random.normal(kv, (1, head_conv), jnp.float32)) + 0.5
            scale = gamma / jnp.sqrt(var + eps)          # fold BN1d (eval) affine
            shift = beta - mean * scale
            mid.append((w, scale, shift))
            c_in = head_conv
        key, kw, kb = jax.random.split(key, 3)
        final_w = jax.random.normal(kw, (c_in, classes), jnp.float32) * 0.05
        if head == 'heatmap':
            final_b = jnp.full((1, classes), init_bias, jnp.float32)
        else:
            final_b = 0.1 * jax.random.normal(kb, (1, classes), jnp.float32)
        params[head] = (mid, final_w, final_b)
    return params


def fuse_ffn_params(params, heads, lane=128):
    """Fold BN scale into conv weights and fuse all heads into one param set.

    Layer 0 (shared x input): concatenate per-head weights along the out axis.
    Layers >=1 and the final conv: block-diagonal (heads never mix).
    Final weight/bias columns zero-padded to a multiple of `lane` so the
    kernel's output store is lane-dense.  Matmul weights bf16; shifts/bias f32.
    """
    head_names = list(heads.keys())
    depths = {h: len(params[h][0]) for h in head_names}
    assert len(set(depths.values())) == 1, \
        "fused kernel requires equal num_conv across heads"
    # TODO(synk): heads with differing num_conv would need a per-head fallback path.
    num_mid = depths[head_names[0]]

    mid_ws, mid_ts = [], []
    for layer in range(num_mid):
        ws, ts = [], []
        for h in head_names:
            w, s, t = params[h][0][layer]
            ws.append(w * s)                 # fold BN scale (columnwise) into weight
            ts.append(t)
        if layer == 0:
            W = jnp.concatenate(ws, axis=1)  # shared input -> concat output channels
        else:
            W = block_diag(*ws)              # per-head channels stay separate
        mid_ws.append(W.astype(jnp.bfloat16))
        mid_ts.append(jnp.concatenate(ts, axis=1).astype(jnp.float32))

    f_ws = [params[h][1] for h in head_names]
    f_bs = [params[h][2] for h in head_names]
    final_w = (jnp.concatenate(f_ws, axis=1) if num_mid == 0
               else block_diag(*f_ws))
    final_b = jnp.concatenate(f_bs, axis=1)
    c_total = final_w.shape[1]

    # Lane-dense output: zero-pad the final N to a multiple of 128 so the HBM
    # writeback is an unmasked full-lane store.  Extra MXU work is zero (MXU
    # pads N internally anyway); padded weight is ~48 KB bf16.
    n_pad = -(-c_total // lane) * lane
    if n_pad != c_total:
        final_w = jnp.pad(final_w, ((0, 0), (0, n_pad - c_total)))
        final_b = jnp.pad(final_b, ((0, 0), (0, n_pad - c_total)))
    final_w = final_w.astype(jnp.bfloat16)
    final_b = final_b.astype(jnp.float32)

    head_slices, off = {}, 0
    for h in head_names:
        classes = heads[h][0]
        head_slices[h] = (off, off + classes)
        off += classes

    return mid_ws, mid_ts, final_w, final_b, head_slices, c_total


# ----------------------------------------------------------------------------
# Pure-JAX per-head reference (f32, unfolded BN) for correctness check
# ----------------------------------------------------------------------------
def ffn_head_reference(x_blc, mid_params, final_w, final_b):
    h = x_blc.astype(jnp.float32)
    for (w, s, t) in mid_params:
        h = jnp.maximum(jnp.einsum('blc,ch->blh', h, w) * s + t, 0.0)
    return jnp.einsum('blh,ho->blo', h, final_w) + final_b


# ----------------------------------------------------------------------------
# Main
# ----------------------------------------------------------------------------
if __name__ == "__main__":
    # Small, FFN-consistent shapes: batch=2, in_channels=32, L (num proposals)=16
    B, C_IN, L = 2, 32, 16
    HEAD_CONV = 32
    HEADS = {
        'reg': (2, 2),
        'height': (1, 2),
        'dim': (3, 2),
        'rot': (2, 2),
        'vel': (2, 2),
        'heatmap': (3, 2),
    }

    key = jax.random.PRNGKey(0)
    key, kx = jax.random.split(key)
    x = jax.random.normal(kx, (B, C_IN, L), jnp.float32)   # PyTorch NCL layout

    params = init_ffn_params(key, C_IN, HEADS, HEAD_CONV, init_bias=-2.19)
    fused = fuse_ffn_params(params, HEADS)

    # jit the whole forward so the surrounding transpose / slices fuse with
    # the pallas_call's neighbours instead of being standalone XLA launches.
    ffn = jax.jit(lambda xx: ffn_forward(xx, fused))
    out = ffn(x)
    out = jax.tree_util.tree_map(jax.block_until_ready, out)

    # Correctness check vs pure-JAX per-head f32 reference.
    x_blc = jnp.transpose(x, (0, 2, 1))
    for head, (mid, fw, fb) in params.items():
        expected = jnp.transpose(ffn_head_reference(x_blc, mid, fw, fb), (0, 2, 1))
        np.testing.assert_allclose(np.asarray(out[head]), np.asarray(expected),
                                   rtol=2e-2, atol=2e-2)
        classes = HEADS[head][0]
        assert out[head].shape == (B, classes, L), (head, out[head].shape)

    print("KERNEL_OK")
</pallas_src>

<mosaic_0001>
module attributes {stable_mosaic.version = 11 : i64} {
  func.func @kernel(%arg0: i32, %arg1: memref<16x32xbf16, #tpu.memory_space<vmem>>, %arg2: memref<32x192xbf16, #tpu.memory_space<vmem>>, %arg3: memref<1x192xf32, #tpu.memory_space<vmem>>, %arg4: memref<192x128xbf16, #tpu.memory_space<vmem>>, %arg5: memref<1x128xf32, #tpu.memory_space<vmem>>, %arg6: memref<16x128xbf16, #tpu.memory_space<vmem>>) attributes {dimension_semantics = [#tpu.dimension_semantics<parallel>], iteration_bounds = array<i64: 2>, scalar_prefetch = 0 : i64, scratch_operands = 0 : i64, tpu.core_type = #tpu.core_type<tc>, window_params = [{transform_indices = @transform_0, window_bounds = array<i64: 16, 32>}, {pipeline_mode = #tpu.pipeline_mode<synchronous>, transform_indices = @transform_1, window_bounds = array<i64: 32, 192>}, {pipeline_mode = #tpu.pipeline_mode<synchronous>, transform_indices = @transform_2, window_bounds = array<i64: 1, 192>}, {pipeline_mode = #tpu.pipeline_mode<synchronous>, transform_indices = @transform_3, window_bounds = array<i64: 192, 128>}, {pipeline_mode = #tpu.pipeline_mode<synchronous>, transform_indices = @transform_4, window_bounds = array<i64: 1, 128>}, {transform_indices = @transform_5, window_bounds = array<i64: 16, 128>}]} {
    %c0 = arith.constant 0 : index
    %c0_0 = arith.constant 0 : index
    %0 = vector.load %arg1[%c0, %c0_0] : memref<16x32xbf16, #tpu.memory_space<vmem>>, vector<16x32xbf16>
    %c0_1 = arith.constant 0 : index
    %c0_2 = arith.constant 0 : index
    %1 = vector.load %arg2[%c0_1, %c0_2] : memref<32x192xbf16, #tpu.memory_space<vmem>>, vector<32x192xbf16>
    %c0_3 = arith.constant 0 : index
    %c0_4 = arith.constant 0 : index
    %2 = vector.load %arg3[%c0_3, %c0_4] : memref<1x192xf32, #tpu.memory_space<vmem>>, vector<1x192xf32>
    %cst = arith.constant dense<0.000000e+00> : vector<16x192xf32>
    %3 = tpu.matmul %0, %1, %cst {dimension_numbers = #tpu.dot_dimension_numbers<[1], [0], [0], [1], [0, 0, 1, 1], [], []>} : vector<16x32xbf16>, vector<32x192xbf16>, vector<16x192xf32> -> vector<16x192xf32>
    %4 = vector.broadcast %2 : vector<1x192xf32> to vector<16x192xf32>
    %5 = arith.addf %3, %4 : vector<16x192xf32>
    %cst_5 = arith.constant 0.000000e+00 : f32
    %6 = vector.broadcast %cst_5 : f32 to vector<16x192xf32>
    %7 = arith.maximumf %5, %6 : vector<16x192xf32>
    %8 = arith.truncf %7 : vector<16x192xf32> to vector<16x192xbf16>
    %c0_6 = arith.constant 0 : index
    %c0_7 = arith.constant 0 : index
    %9 = vector.load %arg4[%c0_6, %c0_7] : memref<192x128xbf16, #tpu.memory_space<vmem>>, vector<192x128xbf16>
    %c0_8 = arith.constant 0 : index
    %c0_9 = arith.constant 0 : index
    %10 = vector.load %arg5[%c0_8, %c0_9] : memref<1x128xf32, #tpu.memory_space<vmem>>, vector<1x128xf32>
    %cst_10 = arith.constant dense<0.000000e+00> : vector<16x128xf32>
    %11 = tpu.matmul %8, %9, %cst_10 {dimension_numbers = #tpu.dot_dimension_numbers<[1], [0], [0], [1], [0, 0, 1, 1], [], []>} : vector<16x192xbf16>, vector<192x128xbf16>, vector<16x128xf32> -> vector<16x128xf32>
    %12 = vector.broadcast %10 : vector<1x128xf32> to vector<16x128xf32>
    %13 = arith.addf %11, %12 : vector<16x128xf32>
    %14 = arith.truncf %13 : vector<16x128xf32> to vector<16x128xbf16>
    %c0_11 = arith.constant 0 : index
    %c0_12 = arith.constant 0 : index
    %15 = vector.load %arg6[%c0_11, %c0_12] : memref<16x128xbf16, #tpu.memory_space<vmem>>, vector<16x128xbf16>
    tpu.vector_store %arg6[%c0_11, %c0_12], %14 {strides = array<i32>} : memref<16x128xbf16, #tpu.memory_space<vmem>>, vector<16x128xbf16>,
    return
  }
  func.func @transform_0(%arg0: i32) -> (i32, i32) {
    %c0_i32 = arith.constant 0 : i32
    %c0_i32_0 = arith.constant 0 : i32
    return %arg0, %c0_i32 : i32, i32
  }
  func.func @transform_1(%arg0: i32) -> (i32, i32) {
    %c0_i32 = arith.constant 0 : i32
    %c0_i32_0 = arith.constant 0 : i32
    %c0_i32_1 = arith.constant 0 : i32
    return %c0_i32, %c0_i32_0 : i32, i32
  }
  func.func @transform_2(%arg0: i32) -> (i32, i32) {
    %c0_i32 = arith.constant 0 : i32
    %c0_i32_0 = arith.constant 0 : i32
    %c0_i32_1 = arith.constant 0 : i32
    return %c0_i32, %c0_i32_0 : i32, i32
  }
  func.func @transform_3(%arg0: i32) -> (i32, i32) {
    %c0_i32 = arith.constant 0 : i32
    %c0_i32_0 = arith.constant 0 : i32
    %c0_i32_1 = arith.constant 0 : i32
    return %c0_i32, %c0_i32_0 : i32, i32
  }
  func.func @transform_4(%arg0: i32) -> (i32, i32) {
    %c0_i32 = arith.constant 0 : i32
    %c0_i32_0 = arith.constant 0 : i32
    %c0_i32_1 = arith.constant 0 : i32
    return %c0_i32, %c0_i32_0 : i32, i32
  }
  func.func @transform_5(%arg0: i32) -> (i32, i32) {
    %c0_i32 = arith.constant 0 : i32
    %c0_i32_0 = arith.constant 0 : i32
    return %arg0, %c0_i32 : i32, i32
  }
}

</mosaic_0001>

<llo_original>
// kernel: _lambda_.1
$region0: #{_lambda_.1}
  #allocation0 [shape = 'u32[]', space=smem, size = 0x4, offset = 0x4, fixed_abs, tag = 'smem constant byte address 0x4 - core index']
  #allocation1 [shape = 'u32[144,128]{1,0:T(1,128)}', space=vmem, size = 0x12000, scoped, tag = 'internal scratch']
  %s0 = inlined_call_operand.vmem [shape: bf16[32,32], index: 0, kind: input, shape index: {}]
  %s1 = inlined_call_operand.vmem [shape: bf16[32,192], index: 1, kind: input, shape index: {}]
  %s2 = inlined_call_operand.vmem [shape: f32[1,192], index: 2, kind: input, shape index: {}]
  %s3 = inlined_call_operand.vmem [shape: bf16[192,128], index: 3, kind: input, shape index: {}]
  %s4 = inlined_call_operand.vmem [shape: f32[1,128], index: 4, kind: input, shape index: {}]
  %s5 = inlined_call_operand.vmem [shape: bf16[32,128], index: 5, kind: output, shape index: {}]
  %s6 = sld [smem:[#allocation0]]
  $region53: #{_lambda_.1} parent=0
    _
  %s8 = ssub.s32 1, %s6
  %s9 = scalar_select 0, %s8, %s6
  loop: start=0, step=1, limit=4
  $region2: #{_lambda_.1} parent=0 // loop_pre_header
    _
  $region3: #{_lambda_.1} parent=0 // loop_header
    %s11 = sphi 0, %s15
    %p12 = scmp.ge.s32.totalorder %s11, 4
    %s21 = sphi 0, %s23
    %s24 = sphi 0, %s21
    %s25 = sphi 0, %s24
    %s41 = sphi 0, %s25
    %s45 = sphi 0, %s45
    %s47 = sphi 0, %s45
    %s48 = sphi 0, %s47
    %s62 = sphi 0, %s48
    %s66 = sphi 0, %s66
    %s68 = sphi 0, %s66
    %s69 = sphi 0, %s68
    %s83 = sphi 0, %s69
    %s87 = sphi 0, %s87
    %s89 = sphi 0, %s87
    %s90 = sphi 0, %s89
    %s104 = sphi 0, %s90
    %s108 = sphi 0, %s108
    %s110 = sphi 0, %s108
    %s111 = sphi 0, %s110
    %s125 = sphi 0, %s111
    %s131 = sphi 0, %s133
    %s134 = sphi 0, %s131
    %s135 = sphi 0, %s134
    %s151 = sphi 0, %s135
  $region4: #{_lambda_.1} parent=0 // loop_header_branch
    %14 = sbr.rel (%p12) target = $region8
  $region5: #{_lambda_.1} parent=0 // loop_body
    %s16 = ssub.s32 %s11, 1
    %s17 = ssub.s32 %s11, 2
    %s18 = sadd.s32 %s11, 1
    %s19 = ssub.s32 %s11, %s18
    %p20 = scmp.eq.s32.totalorder %s19, 0
    %s22 = sadd.s32 %s21, 1
    %s23 = scalar_select %p20, %s21, %s22
    %p26 = pneg %p20
    %p27 = scmp.eq.s32.totalorder %s11, 1
    %p28 = por %p26, %p27
    %p29 = scmp.ne.s32.totalorder %s21, %s24
    %p30 = scmp.eq.s32.totalorder %s11, 0
    %p31 = por %p29, %p30
    %p32 = scmp.ne.s32.totalorder %s21, %s24
    %p33 = scmp.eq.s32.totalorder %s16, 1
    %p34 = por %p32, %p33
    %p35 = scmp.ne.s32.totalorder %s24, %s25
    %p36 = scmp.eq.s32.totalorder %s16, 0
    %p37 = por %p35, %p36
    %p38 = scmp.ne.s32.totalorder %s24, %s25
    %p39 = scmp.eq.s32.totalorder %s17, 1
    %p40 = por %p38, %p39
    %p42 = scmp.ne.s32.totalorder %s25, %s41
    %p43 = scmp.eq.s32.totalorder %s17, 0
    %p44 = por %p42, %p43
    %s46 = sadd.s32 %s45, 1
    %p49 = scmp.eq.s32.totalorder %s11, 1
    %p50 = scmp.ne.s32.totalorder %s45, %s47
    %p51 = scmp.eq.s32.totalorder %s11, 0
    %p52 = por %p50, %p51
    %p53 = scmp.ne.s32.totalorder %s45, %s47
    %p54 = scmp.eq.s32.totalorder %s16, 1
    %p55 = por %p53, %p54
    %p56 = scmp.ne.s32.totalorder %s47, %s48
    %p57 = scmp.eq.s32.totalorder %s16, 0
    %p58 = por %p56, %p57
    %p59 = scmp.ne.s32.totalorder %s47, %s48
    %p60 = scmp.eq.s32.totalorder %s17, 1
    %p61 = por %p59, %p60
    %p63 = scmp.ne.s32.totalorder %s48, %s62
    %p64 = scmp.eq.s32.totalorder %s17, 0
    %p65 = por %p63, %p64
    %s67 = sadd.s32 %s66, 1
    %p70 = scmp.eq.s32.totalorder %s11, 1
    %p71 = scmp.ne.s32.totalorder %s66, %s68
    %p72 = scmp.eq.s32.totalorder %s11, 0
    %p73 = por %p71, %p72
    %p74 = scmp.ne.s32.totalorder %s66, %s68
    %p75 = scmp.eq.s32.totalorder %s16, 1
    %p76 = por %p74, %p75
    %p77 = scmp.ne.s32.totalorder %s68, %s69
    %p78 = scmp.eq.s32.totalorder %s16, 0
    %p79 = por %p77, %p78
    %p80 = scmp.ne.s32.totalorder %s68, %s69
    %p81 = scmp.eq.s32.totalorder %s17, 1
    %p82 = por %p80, %p81
    %p84 = scmp.ne.s32.totalorder %s69, %s83
    %p85 = scmp.eq.s32.totalorder %s17, 0
    %p86 = por %p84, %p85
    %s88 = sadd.s32 %s87, 1
    %p91 = scmp.eq.s32.totalorder %s11, 1
    %p92 = scmp.ne.s32.totalorder %s87, %s89
    %p93 = scmp.eq.s32.totalorder %s11, 0
    %p94 = por %p92, %p93
    %p95 = scmp.ne.s32.totalorder %s87, %s89
    %p96 = scmp.eq.s32.totalorder %s16, 1
    %p97 = por %p95, %p96
    %p98 = scmp.ne.s32.totalorder %s89, %s90
    %p99 = scmp.eq.s32.totalorder %s16, 0
    %p100 = por %p98, %p99
    %p101 = scmp.ne.s32.totalorder %s89, %s90
    %p102 = scmp.eq.s32.totalorder %s17, 1
    %p103 = por %p101, %p102
    %p105 = scmp.ne.s32.totalorder %s90, %s104
    %p106 = scmp.eq.s32.totalorder %s17, 0
    %p107 = por %p105, %p106
    %s109 = sadd.s32 %s108, 1
    %p112 = scmp.eq.s32.totalorder %s11, 1
    %p113 = scmp.ne.s32.totalorder %s108, %s110
    %p114 = scmp.eq.s32.totalorder %s11, 0
    %p115 = por %p113, %p114
    %p116 = scmp.ne.s32.totalorder %s108, %s110
    %p117 = scmp.eq.s32.totalorder %s16, 1
    %p118 = por %p116, %p117
    %p119 = scmp.ne.s32.totalorder %s110, %s111
    %p120 = scmp.eq.s32.totalorder %s16, 0
    %p121 = por %p119, %p120
    %p122 = scmp.ne.s32.totalorder %s110, %s111
    %p123 = scmp.eq.s32.totalorder %s17, 1
    %p124 = por %p122, %p123
    %p126 = scmp.ne.s32.totalorder %s111, %s125
    %p127 = scmp.eq.s32.totalorder %s17, 0
    %p128 = por %p126, %p127
    %s129 = ssub.s32 %s11, %s18
    %p130 = scmp.eq.s32.totalorder %s129, 0
    %s132 = sadd.s32 %s131, 1
    %s133 = scalar_select %p130, %s131, %s132
    %p136 = pneg %p130
    %p137 = scmp.eq.s32.totalorder %s11, 1
    %p138 = por %p136, %p137
    %p139 = scmp.ne.s32.totalorder %s131, %s134
    %p140 = scmp.eq.s32.totalorder %s11, 0
    %p141 = por %p139, %p140
    %p142 = scmp.ne.s32.totalorder %s131, %s134
    %p143 = scmp.eq.s32.totalorder %s16, 1
    %p144 = por %p142, %p143
    %p145 = scmp.ne.s32.totalorder %s134, %s135
    %p146 = scmp.eq.s32.totalorder %s16, 0
    %p147 = por %p145, %p146
    %p148 = scmp.ne.s32.totalorder %s134, %s135
    %p149 = scmp.eq.s32.totalorder %s17, 1
    %p150 = por %p148, %p149
    %p152 = scmp.ne.s32.totalorder %s135, %s151
    %p153 = scmp.eq.s32.totalorder %s17, 0
    %p154 = por %p152, %p153
    %p155 = scmp.le.s32.totalorder 1, %s11
    %p156 = scmp.lt.s32.totalorder %s11, 3
    %p157 = pnand %p155, %p156
    %p158 = pneg %p157
    // Predicated region
    $region9: #{_lambda_.1} parent=5 // pred_check
      _
    $region10: #{_lambda_.1} parent=5 // pred_check_branch
      %160 = sbr.rel (%p157) target = $region12
    $region11: #{_lambda_.1} parent=5 // pred_region
      %s161 = ssub.s32 %s11, 1
      // Predicated region
      $region13: #{_lambda_.1} parent=11 // pred_check
        %p162 = pneg %p58
      $region14: #{_lambda_.1} parent=11 // pred_check_branch
        %164 = sbr.rel (%p162) target = $region16
      $region15: #{_lambda_.1} parent=11 // pred_region
        _
      $region16: #{_lambda_.1} parent=11 // pred_fallthru
        _
      // Predicated region
      $region17: #{_lambda_.1} parent=11 // pred_check
        %p165 = pneg %p79
      $region18: #{_lambda_.1} parent=11 // pred_check_branch
        %167 = sbr.rel (%p165) target = $region20
      $region19: #{_lambda_.1} parent=11 // pred_region
        _
      $region20: #{_lambda_.1} parent=11 // pred_fallthru
        _
      // Predicated region
      $region21: #{_lambda_.1} parent=11 // pred_check
        %p168 = pneg %p100
      $region22: #{_lambda_.1} parent=11 // pred_check_branch
        %170 = sbr.rel (%p168) target = $region24
      $region23: #{_lambda_.1} parent=11 // pred_region
        _
      $region24: #{_lambda_.1} parent=11 // pred_fallthru
        _
      // Predicated region
      $region25: #{_lambda_.1} parent=11 // pred_check
        %p171 = pneg %p121
      $region26: #{_lambda_.1} parent=11 // pred_check_branch
        %173 = sbr.rel (%p171) target = $region28
      $region27: #{_lambda_.1} parent=11 // pred_region
        _
      $region28: #{_lambda_.1} parent=11 // pred_fallthru
        _
    $region12: #{_lambda_.1} parent=5 // pred_fallthru
      _
    %p174 = scmp.lt.s32.totalorder %s11, 2
    // Predicated region
    $region29: #{_lambda_.1} parent=5 // pred_check
      %p175 = pneg %p174
    $region30: #{_lambda_.1} parent=5 // pred_check_branch
      %177 = sbr.rel (%p175) target = $region32
    $region31: #{_lambda_.1} parent=5 // pred_region
      // Predicated region
      $region33: #{_lambda_.1} parent=31 // pred_check
        %p178 = pneg %p31
      $region34: #{_lambda_.1} parent=31 // pred_check_branch
        %180 = sbr.rel (%p178) target = $region36
      $region35: #{_lambda_.1} parent=31 // pred_region
        %s181 = smul.u32 2, %s11
        %p182 = scmp.lt.s32.totalorder %s181, 3
        %s183 = scalar_select %p182, %s181, 3
        %s184 = smul.addr %s183, 4
        %s185 = scalar_lea.vmem %s0, %s184
        %s186 = smul.u32 2, %s11
      $region36: #{_lambda_.1} parent=31 // pred_fallthru
        _
    $region32: #{_lambda_.1} parent=5 // pred_fallthru
      _
    %p187 = scmp.le.s32.totalorder 1, %s11
    %p188 = scmp.lt.s32.totalorder %s11, 3
    %p189 = pnand %p187, %p188
    %p190 = pneg %p189
    // Predicated region
    $region37: #{_lambda_.1} parent=5 // pred_check
      _
    $region38: #{_lambda_.1} parent=5 // pred_check_branch
      %192 = sbr.rel (%p189) target = $region40
    $region39: #{_lambda_.1} parent=5 // pred_region
      %s193 = ssub.s32 %s11, 1
      %s194 = smul.u32 2, %s16
      %p195 = scmp.lt.s32.totalorder %s194, 3
      %s196 = scalar_select %p195, %s194, 3
      %s197 = smul.addr %s196, 4
      %s198 = scalar_lea.vmem %s0, %s197
      %p199 = pneg %p37
      %p200 = pneg %p34
      %p201 = pneg %p58
      %p202 = pneg %p55
      %p203 = pneg %p79
      %p204 = pneg %p76
      %p205 = pneg %p100
      %p206 = pneg %p97
      %p207 = pneg %p121
      %p208 = pneg %p118
      %p209 = pneg %p147
      %p210 = pneg %p144
      %s211 = smul.u32 2, %s16
      %p212 = scmp.lt.s32.totalorder %s211, 3
      %s213 = scalar_select %p212, %s211, 3
      %s214 = smul.addr %s213, 4
      %s215 = scalar_lea.vmem %s5, %s214
      %s216 = smul.u32 2, %s16
      %p217 = scmp.lt.s32.totalorder %s216, 3
      %s218 = scalar_select %p217, %s216, 3
      %s219 = smul.addr %s218, 4
      %s220 = scalar_lea.vmem %s0, %s219
      %s221 = smul.u32 2, %s16
      %s222 = smul.u32 2, %s16
      %p223 = scmp.lt.s32.totalorder %s222, 3
      %s224 = scalar_select %p223, %s222, 3
      %s225 = smul.addr %s224, 4
      %s226 = scalar_lea.vmem %s5, %s225
      %s227 = smul.u32 2, %s16
      %v229 = vld [vmem:[%s220] sm:$0xf]
      %v230 = vld [vmem:[%s220 + $0x4] sm:$0xf]
      %v231 = vld [vmem:[%s1] sm:$0xff]
      %v232 = vld [vmem:[%s1 + $0x8] sm:$0xff]
      %v233 = vld [vmem:[%s1 + $0x10] sm:$0xff]
      %v234 = vld [vmem:[%s1 + $0x18] sm:$0xff]
      %v235 = vld [vmem:[%s2] sm:$0x3]
      %v237 = vlaneseq
      %v238 = vshrl.u32 %v237, 7
      %v239 = vsub.s32 0, %v238
      %v240 = vrot.slane %v235, %v239
      %v241 = vlaneseq
      %v242 = vshrl.u32 %v241, 7
      %v243 = vsub.s32 1, %v242
      %v244 = vrot.slane %v235, %v243
      %v249 = vunpack.c.l.b16 %v229
      %v250 = vunpack.c.l.b16 %v230
      %v251 = vpack.c.b16 %v250, %v249
      %v256 = vunpack.c.l.b16 %v231
      %v257 = vunpack.c.h.b16 %v231
      %v258 = vunpack.c.l.b16 %v232
      %v259 = vunpack.c.h.b16 %v232
      %v260 = vunpack.c.l.b16 %v233
      %v261 = vunpack.c.h.b16 %v233
      %v262 = vunpack.c.l.b16 %v234
      %v263 = vunpack.c.h.b16 %v234
      %v264 = vpack.c.b16 %v258, %v256
      %v265 = vpack.c.b16 %v259, %v257
      %v266 = vpack.c.b16 %v262, %v260
      %v267 = vpack.c.b16 %v263, %v261
      %vm272 = vcmask 261120
      %v274 = vsel %vm272, %v251, 0
      %276 = vmatprep.subr.bf16.mxu0 %v265
      %277 = vmatpush1.bf16.msra.mxu0 %v264
      %278 = vmatprep.subr.bf16.mxu0 %v267
      %279 = vmatpush1.bf16.msra.mxu0 %v266
      %280 = vmatprep.subr.bf16.mxu0 0
      %281 = vmatpush1.bf16.msra.mxu0 0
      %282 = vmatprep.subr.bf16.mxu0 0
      %283 = vmatpush1.bf16.msra.mxu0 0
      %284 = vmatprep.subr.bf16.mxu0 0
      %285 = vmatpush1.bf16.msra.mxu0 0
      %286 = vmatprep.subr.bf16.mxu0 0
      %287 = vmatpush1.bf16.msra.mxu0 0
      %288 = vmatprep.subr.bf16.mxu0 0
      %289 = vmatpush1.bf16.msra.mxu0 0
      %290 = vmatprep.subr.bf16.mxu0 0
      %291 = vmatpush1.bf16.msra.mxu0 0
      %292 = vmatprep.subr.bf16.mxu0 0
      %293 = vmatpush1.bf16.msra.mxu0 0
      %294 = vmatprep.subr.bf16.mxu0 0
      %295 = vmatpush1.bf16.msra.mxu0 0
      %296 = vmatprep.subr.bf16.mxu0 0
      %297 = vmatpush1.bf16.msra.mxu0 0
      %298 = vmatprep.subr.bf16.mxu0 0
      %299 = vmatpush1.bf16.msra.mxu0 0
      %300 = vmatprep.subr.bf16.mxu0 0
      %301 = vmatpush1.bf16.msra.mxu0 0
      %302 = vmatprep.subr.bf16.mxu0 0
      %303 = vmatpush1.bf16.msra.mxu0 0
      %304 = vmatprep.subr.bf16.mxu0 0
      %305 = vmatpush1.bf16.msra.mxu0 0
      %306 = vmatprep.subr.bf16.mxu0 0
      %307 = vmatpush1.bf16.msra.mxu0 0
      %308 = vmatprep.mubr.bf16.mxu0 0
      %309 = vmatmul.mubr.bf16.gmra.mrb[0].mxu0 %v274
      %v310 = vpop.f32.mrb[0].mxu0
      %v311 = vadd.f32 %v240, %v310
      %v312 = vpop.f32.mrb[0].mxu0
      %v313 = vadd.f32 %v244, %v312
      %v314 = vpop.f32.mrb[0].mxu0
      %v315 = vadd.f32 %v240, %v314
      %v316 = vpop.f32.mrb[0].mxu0
      %v317 = vadd.f32 %v244, %v316
      %318 = vdwg.mxu0
      %v319 = vmax.f32 %v311, 0.0
      %v320 = vmax.f32 %v313, 0.0
      %v321 = vmax.f32 %v315, 0.0
      %v322 = vmax.f32 %v317, 0.0
      %v323 = vpack.c.bf16 %v321, %v319
      %v324 = vpack.c.bf16 %v322, %v320
      %v325 = vld [vmem:[%s3] sm:$0xf]
      %v326 = vld [vmem:[%s3 + $0x4] sm:$0xf]
      %v327 = vld [vmem:[%s3 + $0x8] sm:$0xf]
      %v328 = vld [vmem:[%s3 + $0xc] sm:$0xf]
      %v329 = vld [vmem:[%s3 + $0x10] sm:$0xf]
      %v330 = vld [vmem:[%s3 + $0x14] sm:$0xf]
      %v331 = vld [vmem:[%s3 + $0x18] sm:$0xf]
      %v332 = vld [vmem:[%s3 + $0x1c] sm:$0xf]
      %v333 = vld [vmem:[%s3 + $0x20] sm:$0xf]
      %v334 = vld [vmem:[%s3 + $0x24] sm:$0xf]
      %v335 = vld [vmem:[%s3 + $0x28] sm:$0xf]
      %v336 = vld [vmem:[%s3 + $0x2c] sm:$0xf]
      %v337 = vld [vmem:[%s3 + $0x30] sm:$0xf]
      %v338 = vld [vmem:[%s3 + $0x34] sm:$0xf]
      %v339 = vld [vmem:[%s3 + $0x38] sm:$0xf]
      %v340 = vld [vmem:[%s3 + $0x3c] sm:$0xf]
      %v341 = vld [vmem:[%s3 + $0x40] sm:$0xf]
      %v342 = vld [vmem:[%s3 + $0x44] sm:$0xf]
      %v343 = vld [vmem:[%s3 + $0x48] sm:$0xf]
      %v344 = vld [vmem:[%s3 + $0x4c] sm:$0xf]
      %v345 = vld [vmem:[%s3 + $0x50] sm:$0xf]
      %v346 = vld [vmem:[%s3 + $0x54] sm:$0xf]
      %v347 = vld [vmem:[%s3 + $0x58] sm:$0xf]
      %v348 = vld [vmem:[%s3 + $0x5c] sm:$0xf]
      %v349 = vld [vmem:[%s4] sm:$0x1]
      %v351 = vlaneseq
      %v352 = vshrl.u32 %v351, 7
      %v353 = vsub.s32 0, %v352
      %v354 = vrot.slane %v349, %v353
      %v380 = vunpack.c.l.b16 %v325
      %v381 = vunpack.c.l.b16 %v326
      %v382 = vunpack.c.l.b16 %v327
      %v383 = vunpack.c.l.b16 %v328
      %v384 = vunpack.c.l.b16 %v329
      %v385 = vunpack.c.l.b16 %v330
      %v386 = vunpack.c.l.b16 %v331
      %v387 = vunpack.c.l.b16 %v332
      %v388 = vunpack.c.l.b16 %v333
      %v389 = vunpack.c.l.b16 %v334
      %v390 = vunpack.c.l.b16 %v335
      %v391 = vunpack.c.l.b16 %v336
      %v392 = vunpack.c.l.b16 %v337
      %v393 = vunpack.c.l.b16 %v338
      %v394 = vunpack.c.l.b16 %v339
      %v395 = vunpack.c.l.b16 %v340
      %v396 = vunpack.c.l.b16 %v341
      %v397 = vunpack.c.l.b16 %v342
      %v398 = vunpack.c.l.b16 %v343
      %v399 = vunpack.c.l.b16 %v344
      %v400 = vunpack.c.l.b16 %v345
      %v401 = vunpack.c.l.b16 %v346
      %v402 = vunpack.c.l.b16 %v347
      %v403 = vunpack.c.l.b16 %v348
      %v404 = vpack.c.b16 %v381, %v380
      %v405 = vpack.c.b16 %v383, %v382
      %v406 = vpack.c.b16 %v385, %v384
      %v407 = vpack.c.b16 %v387, %v386
      %v408 = vpack.c.b16 %v389, %v388
      %v409 = vpack.c.b16 %v391, %v390
      %v410 = vpack.c.b16 %v393, %v392
      %v411 = vpack.c.b16 %v395, %v394
      %v412 = vpack.c.b16 %v397, %v396
      %v413 = vpack.c.b16 %v399, %v398
      %v414 = vpack.c.b16 %v401, %v400
      %v415 = vpack.c.b16 %v403, %v402
      %vm428 = vcmask 523264
      %v430 = vsel %vm428, %v324, 0
      %432 = vmatprep.subr.bf16.mxu0 0
      %433 = vmatpush1.bf16.msra.mxu0 %v404
      %434 = vmatprep.subr.bf16.mxu0 0
      %435 = vmatpush1.bf16.msra.mxu0 %v405
      %436 = vmatprep.subr.bf16.mxu0 0
      %437 = vmatpush1.bf16.msra.mxu0 %v406
      %438 = vmatprep.subr.bf16.mxu0 0
      %439 = vmatpush1.bf16.msra.mxu0 %v407
      %440 = vmatprep.subr.bf16.mxu0 0
      %441 = vmatpush1.bf16.msra.mxu0 %v408
      %442 = vmatprep.subr.bf16.mxu0 0
      %443 = vmatpush1.bf16.msra.mxu0 %v409
      %444 = vmatprep.subr.bf16.mxu0 0
      %445 = vmatpush1.bf16.msra.mxu0 %v410
      %446 = vmatprep.subr.bf16.mxu0 0
      %447 = vmatpush1.bf16.msra.mxu0 %v411
      %448 = vmatprep.subr.bf16.mxu0 0
      %449 = vmatpush1.bf16.msra.mxu0 %v412
      %450 = vmatprep.subr.bf16.mxu0 0
      %451 = vmatpush1.bf16.msra.mxu0 %v413
      %452 = vmatprep.subr.bf16.mxu0 0
      %453 = vmatpush1.bf16.msra.mxu0 %v414
      %454 = vmatprep.subr.bf16.mxu0 0
      %455 = vmatpush1.bf16.msra.mxu0 %v415
      %456 = vmatprep.subr.bf16.mxu0 0
      %457 = vmatpush1.bf16.msra.mxu0 0
      %458 = vmatprep.subr.bf16.mxu0 0
      %459 = vmatpush1.bf16.msra.mxu0 0
      %460 = vmatprep.subr.bf16.mxu0 0
      %461 = vmatpush1.bf16.msra.mxu0 0
      %462 = vmatprep.subr.bf16.mxu0 0
      %463 = vmatpush1.bf16.msra.mxu0 0
      %464 = vmatprep.mubr.bf16.mxu0 %v430
      %465 = vmatmul.mubr.bf16.gmra.mrb[0].mxu0 %v323
      %v466 = vpop.f32.mrb[0].mxu0
      %v467 = vadd.f32 %v354, %v466
      %v468 = vpop.f32.mrb[0].mxu0
      %v469 = vpop.f32.mrb[0].mxu0
      %v470 = vadd.f32 %v354, %v469
      %v471 = vpop.f32.mrb[0].mxu0
      %472 = vdwg.mxu0
      %v473 = vpack.c.bf16 %v470, %v467
      %v475 = vunpack.c.l.b16 %v473
      %v476 = vunpack.c.h.b16 %v473
      %v477 = vpack.c.b16 %v475, %v475
      %v478 = vpack.c.b16 %v476, %v476
      %481 = vst [vmem:[%s226] sm:$0xf] %v477
      %482 = vst [vmem:[%s226 + $0x4] sm:$0xf] %v478
      %s483 = smul.u32 2, %s16
      %p484 = scmp.lt.s32.totalorder %s483, 3
      %s485 = scalar_select %p484, %s483, 3
      %s486 = smul.addr %s485, 4
      %s487 = scalar_lea.vmem %s5, %s486
      // Predicated region
      $region41: #{_lambda_.1} parent=39 // pred_check
        %p488 = pneg %p144
      $region42: #{_lambda_.1} parent=39 // pred_check_branch
        %490 = sbr.rel (%p488) target = $region44
      $region43: #{_lambda_.1} parent=39 // pred_region
        %s491 = smul.u32 2, %s16
      $region44: #{_lambda_.1} parent=39 // pred_fallthru
        _
    $region40: #{_lambda_.1} parent=5 // pred_fallthru
      _
    %p492 = scmp.le.s32.totalorder 2, %s11
    // Predicated region
    $region45: #{_lambda_.1} parent=5 // pred_check
      %p493 = pneg %p492
    $region46: #{_lambda_.1} parent=5 // pred_check_branch
      %495 = sbr.rel (%p493) target = $region48
    $region47: #{_lambda_.1} parent=5 // pred_region
      %s496 = ssub.s32 %s11, 2
      // Predicated region
      $region49: #{_lambda_.1} parent=47 // pred_check
        %p497 = pneg %p150
      $region50: #{_lambda_.1} parent=47 // pred_check_branch
        %499 = sbr.rel (%p497) target = $region52
      $region51: #{_lambda_.1} parent=47 // pred_region
        %s500 = smul.u32 2, %s17
        %p501 = scmp.lt.s32.totalorder %s500, 3
        %s502 = scalar_select %p501, %s500, 3
        %s503 = smul.addr %s502, 4
        %s504 = scalar_lea.vmem %s5, %s503
      $region52: #{_lambda_.1} parent=47 // pred_fallthru
        _
    $region48: #{_lambda_.1} parent=5 // pred_fallthru
      _
  $region6: #{_lambda_.1} parent=0 // loop_footer
    %s15 = sadd.s32 1, %s11
  $region7: #{_lambda_.1} parent=0 // loop_footer_branch
    %10 = sbr.rel target = $region3
  $region8: #{_lambda_.1} parent=0 // loop_exit
    _

</llo_original>
